<compile_context>
chip_gen: v5e
topology: v5e:2x2
jax: 0.10.0
libtpu: 0.0.40
codegen_flags: <defaults>
</compile_context>

<pallas_src>
import jax
import jax.numpy as jnp
from jax.experimental import pallas as pl
from jax.experimental.pallas import tpu as pltpu


def _hgnn_value_kernel(x_ref, g_ref, w1_ref, w2_ref, wm1_ref, wm2_ref,
                       bias_ref, out_ref):
    f32 = jnp.float32
    x = x_ref[...]               # (tb*N, C)        compute dtype
    g = g_ref[...]               # (tb*N, tb*N)     block-diagonal adjacency
    w1 = w1_ref[...]             # (C, H)
    w2 = w2_ref[...]             # (H, H)
    wm1 = wm1_ref[...]           # (H, M)
    wm2 = wm2_ref[...]           # (M, 1)
    biases = bias_ref[...]       # (4, H) float32

    cd = x.dtype
    tbn = x.shape[0]
    h_dim = w1.shape[1]
    m_dim = wm1.shape[1]
    tb = out_ref.shape[0]
    n_nodes = tbn // tb

    b1 = biases[0]               # (H,)
    b2 = biases[1]               # (H,)
    bm1 = biases[2, :m_dim]      # (M,)
    bm2 = biases[3, :1]          # (1,)

    # ---- conv 1: relu(G @ X @ W1 + b1), reassociated as (G @ X) @ W1 -------
    gx = jnp.dot(g, x, preferred_element_type=f32)                 # (tbN, C)
    h1 = jnp.dot(gx.astype(cd), w1, preferred_element_type=f32)    # (tbN, H)
    h1 = jnp.maximum(h1 + b1, 0.0)                                 # f32 VPU

    # ---- conv 2: relu(G @ (H1 @ W2) + b2) -----------------------------------
    hw = jnp.dot(h1.astype(cd), w2, preferred_element_type=f32)    # (tbN, H)
    h2 = jnp.dot(g, hw.astype(cd), preferred_element_type=f32)     # (tbN, H)
    h2 = jnp.maximum(h2 + b2, 0.0)

    # ---- graph readout: per-graph mean over nodes ---------------------------
    pooled = jnp.mean(h2.reshape(tb, n_nodes, h_dim), axis=1)      # (tb, H)

    # ---- final MLP: H -> M -> 1 ---------------------------------------------
    m = jnp.dot(pooled.astype(cd), wm1, preferred_element_type=f32) + bm1
    m = jnp.maximum(m, 0.0)
    val = jnp.dot(m.astype(cd), wm2, preferred_element_type=f32) + bm2
    out_ref[...] = val.astype(out_ref.dtype)


def graph_state_value(x, g, params, *, tb=None, compute_dtype=jnp.bfloat16):
    """GraphStateFunction forward. x: (B,N,C) node features, g: (B,N,N)
    normalized hypergraph adjacency.  Returns per-graph values (B, 1) f32."""
    (w1, b1), (w2, b2), (wm1, bm1), (wm2, bm2) = params
    B, N, C = x.shape
    H = w1.shape[1]
    M = wm1.shape[1]
    assert M <= H and H >= 1, "bias packing assumes mlp_hidden <= conv_hidden"

    if tb is None:
        # Small batches: one grid step (overhead-bound regime on v5e/v6e).
        # Otherwise keep a 2-way "parallel" grid so v7x's two TCs share work.
        tb = B if (B <= 8 or B % 2) else B // 2
    assert B % tb == 0
    # (8,128) rule applies to the last two block dims only (relaxed assert).
    assert (tb * N) % 8 == 0 or tb == B
    ntiles = B // tb
    tbn = tb * N

    cd = compute_dtype
    # Flat node features: 2-D (B*N, C), consumed directly by the MXU.
    x_flat = x.reshape(B * N, C).astype(cd)

    # Block-diagonal adjacency per tile of tb graphs: both conv contractions
    # become a single lane-dense (tb*N x tb*N) matmul instead of tb batched
    # 16-wide matmuls.  Costs tb x more G bytes from HBM.
    eye = jnp.eye(tb, dtype=g.dtype)
    g_bd = jnp.einsum('tjab,jk->tjakb', g.reshape(ntiles, tb, N, N), eye)
    g_bd = g_bd.reshape(ntiles, tbn, tbn).astype(cd)

    w1c, w2c, wm1c, wm2c = (w.astype(cd) for w in (w1, w2, wm1, wm2))

    # Pack the four biases into one (4, H) f32 array -> a single DMA.
    bias_pack = jnp.zeros((4, H), jnp.float32)
    bias_pack = bias_pack.at[0, :].set(b1)
    bias_pack = bias_pack.at[1, :].set(b2)
    bias_pack = bias_pack.at[2, :M].set(bm1)
    bias_pack = bias_pack.at[3, :1].set(bm2)

    flops = 2 * ntiles * (tbn * tbn * C + tbn * C * H + tbn * H * H
                          + tbn * tbn * H + tb * H * M + tb * M)
    bytes_accessed = (x_flat.size * x_flat.dtype.itemsize
                      + g_bd.size * g_bd.dtype.itemsize
                      + sum(w.size * w.dtype.itemsize
                            for w in (w1c, w2c, wm1c, wm2c))
                      + bias_pack.size * 4 + B * 4)

    def resident(shape):   # constant index map -> DMA'd once, stays in VMEM
        return pl.BlockSpec(shape, lambda i: (0,) * len(shape))

    return pl.pallas_call(
        _hgnn_value_kernel,
        out_shape=jax.ShapeDtypeStruct((B, 1), jnp.float32),
        grid_spec=pltpu.PrefetchScalarGridSpec(
            num_scalar_prefetch=0,
            grid=(ntiles,),
            in_specs=[
                pl.BlockSpec((tbn, C), lambda i: (i, 0)),          # X (flat)
                pl.BlockSpec((None, tbn, tbn), lambda i: (i, 0, 0)),  # G blk-diag
                resident((C, H)),                                  # W1
                resident((H, H)),                                  # W2
                resident((H, M)),                                  # Wm1
                resident((M, 1)),                                  # Wm2
                resident((4, H)),                                  # biases
            ],
            out_specs=pl.BlockSpec((tb, 1), lambda i: (i, 0)),
        ),
        compiler_params=pltpu.CompilerParams(
            dimension_semantics=("parallel",)),
        cost_estimate=pl.CostEstimate(
            flops=flops, transcendentals=0, bytes_accessed=bytes_accessed),
    )(x_flat, g_bd, w1c, w2c, wm1c, wm2c, bias_pack)


def init_hgnn_params(key, in_channels, conv_hidden, mlp_hidden):
    """PyTorch nn.Linear default init: U(-1/sqrt(fan_in), 1/sqrt(fan_in))."""
    dims = [(in_channels, conv_hidden), (conv_hidden, conv_hidden),
            (conv_hidden, mlp_hidden), (mlp_hidden, 1)]
    params = []
    for fan_in, fan_out in dims:
        key, kw, kb = jax.random.split(key, 3)
        bound = 1.0 / jnp.sqrt(jnp.float32(fan_in))
        w = jax.random.uniform(kw, (fan_in, fan_out), jnp.float32, -bound, bound)
        b = jax.random.uniform(kb, (fan_out,), jnp.float32, -bound, bound)
        params.append((w, b))
    return params


def reference_forward(x, g, params):
    """Plain-JAX f32 reference with the module's op ordering."""
    (w1, b1), (w2, b2), (wm1, bm1), (wm2, bm2) = params
    xw = jnp.einsum('bnc,ch->bnh', x, w1)
    h1 = jnp.maximum(jnp.einsum('bnm,bmh->bnh', g, xw) + b1, 0.0)
    hw = jnp.einsum('bnh,hk->bnk', h1, w2)
    h2 = jnp.maximum(jnp.einsum('bnm,bmk->bnk', g, hw) + b2, 0.0)
    pooled = jnp.mean(h2, axis=1)
    m = jnp.maximum(pooled @ wm1 + bm1, 0.0)
    return m @ wm2 + bm2


if __name__ == "__main__":
    # Small deterministic example consistent with the module: in_channels=8,
    # final_mlp_hidden_width=64, conv hidden=128 (assumed), 16 graphs of 16
    # nodes each, 8 hyperedges per graph.
    B, N, C, E = 16, 16, 8, 8
    H, M = 128, 64

    key = jax.random.PRNGKey(0)
    k_x, k_h, k_p = jax.random.split(key, 3)

    x = jax.random.normal(k_x, (B, N, C), jnp.float32)

    # Random hypergraph incidence -> normalized adjacency G per graph (glue).
    inc = (jax.random.uniform(k_h, (B, N, E)) < 0.5).astype(jnp.float32)
    dv = jnp.clip(inc.sum(-1), 1e-6)            # node degrees  (B, N)
    de = jnp.clip(inc.sum(-2), 1e-6)            # edge degrees  (B, E)
    dv_isqrt = 1.0 / jnp.sqrt(dv)
    g = jnp.einsum('bn,bne,be,bme,bm->bnm',
                   dv_isqrt, inc, 1.0 / de, inc, dv_isqrt)

    params = init_hgnn_params(k_p, C, H, M)
    ref = reference_forward(x, g, params)

    # f32 run, 2-step parallel grid (tb=8 -> 128-wide block-diag tiles;
    # shards across v7x's two TCs): tight correctness check.
    v_f32 = graph_state_value(x, g, params, tb=8, compute_dtype=jnp.float32)
    jax.block_until_ready(v_f32)
    assert v_f32.shape == (B, 1)
    assert jnp.allclose(v_f32, ref, atol=2e-3, rtol=2e-3)

    # bf16 inputs (v6e/v7x default path), single-step grid (tb=B -> 256-wide
    # tile); matmuls still accumulate in f32, so tolerance stays modest.
    v_bf16 = graph_state_value(x, g, params, tb=B, compute_dtype=jnp.bfloat16)
    jax.block_until_ready(v_bf16)
    assert v_bf16.shape == (B, 1)
    assert jnp.allclose(v_bf16, ref, atol=5e-2, rtol=5e-2)

    print("KERNEL_OK")
</pallas_src>

<mosaic_0001>
module attributes {stable_mosaic.version = 11 : i64} {
  func.func @_hgnn_value_kernel(%arg0: i32, %arg1: memref<128x8xf32, #tpu.memory_space<vmem>>, %arg2: memref<1x128x128xf32, #tpu.memory_space<vmem>>, %arg3: memref<8x128xf32, #tpu.memory_space<vmem>>, %arg4: memref<128x128xf32, #tpu.memory_space<vmem>>, %arg5: memref<128x64xf32, #tpu.memory_space<vmem>>, %arg6: memref<64x1xf32, #tpu.memory_space<vmem>>, %arg7: memref<4x128xf32, #tpu.memory_space<vmem>>, %arg8: memref<8x1xf32, #tpu.memory_space<vmem>>) attributes {dimension_semantics = [#tpu.dimension_semantics<parallel>], iteration_bounds = array<i64: 2>, scalar_prefetch = 0 : i64, scratch_operands = 0 : i64, tpu.core_type = #tpu.core_type<tc>, window_params = [{transform_indices = @transform_0, window_bounds = array<i64: 128, 8>}, {transform_indices = @transform_1, window_bounds = array<i64: 1, 128, 128>}, {pipeline_mode = #tpu.pipeline_mode<synchronous>, transform_indices = @transform_2, window_bounds = array<i64: 8, 128>}, {pipeline_mode = #tpu.pipeline_mode<synchronous>, transform_indices = @transform_3, window_bounds = array<i64: 128, 128>}, {pipeline_mode = #tpu.pipeline_mode<synchronous>, transform_indices = @transform_4, window_bounds = array<i64: 128, 64>}, {pipeline_mode = #tpu.pipeline_mode<synchronous>, transform_indices = @transform_5, window_bounds = array<i64: 64, 1>}, {pipeline_mode = #tpu.pipeline_mode<synchronous>, transform_indices = @transform_6, window_bounds = array<i64: 4, 128>}, {transform_indices = @transform_7, window_bounds = array<i64: 8, 1>}]} {
    %c0 = arith.constant 0 : index
    %c0_0 = arith.constant 0 : index
    %0 = vector.load %arg1[%c0, %c0_0] : memref<128x8xf32, #tpu.memory_space<vmem>>, vector<128x8xf32>
    %c0_1 = arith.constant 0 : index
    %c0_2 = arith.constant 0 : index
    %c0_3 = arith.constant 0 : index
    %1 = vector.load %arg2[%c0_1, %c0_2, %c0_3] : memref<1x128x128xf32, #tpu.memory_space<vmem>>, vector<1x128x128xf32>
    %2 = vector.shape_cast %1 : vector<1x128x128xf32> to vector<128x128xf32>
    %c0_4 = arith.constant 0 : index
    %c0_5 = arith.constant 0 : index
    %3 = vector.load %arg3[%c0_4, %c0_5] : memref<8x128xf32, #tpu.memory_space<vmem>>, vector<8x128xf32>
    %c0_6 = arith.constant 0 : index
    %c0_7 = arith.constant 0 : index
    %4 = vector.load %arg4[%c0_6, %c0_7] : memref<128x128xf32, #tpu.memory_space<vmem>>, vector<128x128xf32>
    %c0_8 = arith.constant 0 : index
    %c0_9 = arith.constant 0 : index
    %5 = vector.load %arg5[%c0_8, %c0_9] : memref<128x64xf32, #tpu.memory_space<vmem>>, vector<128x64xf32>
    %c0_10 = arith.constant 0 : index
    %c0_11 = arith.constant 0 : index
    %6 = vector.load %arg6[%c0_10, %c0_11] : memref<64x1xf32, #tpu.memory_space<vmem>>, vector<64x1xf32>
    %c0_12 = arith.constant 0 : index
    %c0_13 = arith.constant 0 : index
    %7 = vector.load %arg7[%c0_12, %c0_13] : memref<4x128xf32, #tpu.memory_space<vmem>>, vector<4x128xf32>
    %8 = vector.extract_strided_slice %7 {offsets = [0, 0], sizes = [1, 128], strides = [1, 1]} : vector<4x128xf32> to vector<1x128xf32>
    %9 = vector.shape_cast %8 : vector<1x128xf32> to vector<128xf32>
    %10 = vector.extract_strided_slice %7 {offsets = [1, 0], sizes = [1, 128], strides = [1, 1]} : vector<4x128xf32> to vector<1x128xf32>
    %11 = vector.shape_cast %10 : vector<1x128xf32> to vector<128xf32>
    %12 = vector.extract_strided_slice %7 {offsets = [2, 0], sizes = [1, 64], strides = [1, 1]} : vector<4x128xf32> to vector<1x64xf32>
    %13 = vector.shape_cast %12 : vector<1x64xf32> to vector<64xf32>
    %14 = vector.extract_strided_slice %7 {offsets = [3, 0], sizes = [1, 1], strides = [1, 1]} : vector<4x128xf32> to vector<1x1xf32>
    %15 = vector.shape_cast %14 : vector<1x1xf32> to vector<1xf32>
    %cst = arith.constant dense<0.000000e+00> : vector<128x8xf32>
    %16 = tpu.matmul %2, %0, %cst {dimension_numbers = #tpu.dot_dimension_numbers<[1], [0], [0], [1], [0, 0, 1, 1], [], []>} : vector<128x128xf32>, vector<128x8xf32>, vector<128x8xf32> -> vector<128x8xf32>
    %cst_14 = arith.constant dense<0.000000e+00> : vector<128x128xf32>
    %17 = tpu.matmul %16, %3, %cst_14 {dimension_numbers = #tpu.dot_dimension_numbers<[1], [0], [0], [1], [0, 0, 1, 1], [], []>} : vector<128x8xf32>, vector<8x128xf32>, vector<128x128xf32> -> vector<128x128xf32>
    %18 = vector.shape_cast %9 : vector<128xf32> to vector<1x128xf32>
    %19 = vector.broadcast %18 : vector<1x128xf32> to vector<128x128xf32>
    %20 = arith.addf %17, %19 : vector<128x128xf32>
    %cst_15 = arith.constant 0.000000e+00 : f32
    %21 = vector.broadcast %cst_15 : f32 to vector<128x128xf32>
    %22 = arith.maximumf %20, %21 : vector<128x128xf32>
    %cst_16 = arith.constant dense<0.000000e+00> : vector<128x128xf32>
    %23 = tpu.matmul %22, %4, %cst_16 {dimension_numbers = #tpu.dot_dimension_numbers<[1], [0], [0], [1], [0, 0, 1, 1], [], []>} : vector<128x128xf32>, vector<128x128xf32>, vector<128x128xf32> -> vector<128x128xf32>
    %cst_17 = arith.constant dense<0.000000e+00> : vector<128x128xf32>
    %24 = tpu.matmul %2, %23, %cst_17 {dimension_numbers = #tpu.dot_dimension_numbers<[1], [0], [0], [1], [0, 0, 1, 1], [], []>} : vector<128x128xf32>, vector<128x128xf32>, vector<128x128xf32> -> vector<128x128xf32>
    %25 = vector.shape_cast %11 : vector<128xf32> to vector<1x128xf32>
    %26 = vector.broadcast %25 : vector<1x128xf32> to vector<128x128xf32>
    %27 = arith.addf %24, %26 : vector<128x128xf32>
    %cst_18 = arith.constant 0.000000e+00 : f32
    %28 = vector.broadcast %cst_18 : f32 to vector<128x128xf32>
    %29 = arith.maximumf %27, %28 : vector<128x128xf32>
    %30 = vector.shape_cast %29 : vector<128x128xf32> to vector<8x16x128xf32>
    %cst_19 = arith.constant dense<0.000000e+00> : vector<8x128xf32>
    %31 = vector.multi_reduction <add>, %30, %cst_19 [1] : vector<8x16x128xf32> to vector<8x128xf32>
    %cst_20 = arith.constant 1.600000e+01 : f32
    %32 = vector.broadcast %cst_20 : f32 to vector<8x128xf32>
    %33 = arith.divf %31, %32 : vector<8x128xf32>
    %cst_21 = arith.constant dense<0.000000e+00> : vector<8x64xf32>
    %34 = tpu.matmul %33, %5, %cst_21 {dimension_numbers = #tpu.dot_dimension_numbers<[1], [0], [0], [1], [0, 0, 1, 1], [], []>} : vector<8x128xf32>, vector<128x64xf32>, vector<8x64xf32> -> vector<8x64xf32>
    %35 = vector.shape_cast %13 : vector<64xf32> to vector<1x64xf32>
    %36 = vector.broadcast %35 : vector<1x64xf32> to vector<8x64xf32>
    %37 = arith.addf %34, %36 : vector<8x64xf32>
    %cst_22 = arith.constant 0.000000e+00 : f32
    %38 = vector.broadcast %cst_22 : f32 to vector<8x64xf32>
    %39 = arith.maximumf %37, %38 : vector<8x64xf32>
    %cst_23 = arith.constant dense<0.000000e+00> : vector<8x1xf32>
    %40 = tpu.matmul %39, %6, %cst_23 {dimension_numbers = #tpu.dot_dimension_numbers<[1], [0], [0], [1], [0, 0, 1, 1], [], []>} : vector<8x64xf32>, vector<64x1xf32>, vector<8x1xf32> -> vector<8x1xf32>
    %41 = vector.shape_cast %15 : vector<1xf32> to vector<1x1xf32>
    %42 = vector.broadcast %41 : vector<1x1xf32> to vector<8x1xf32>
    %43 = arith.addf %40, %42 : vector<8x1xf32>
    %c0_24 = arith.constant 0 : index
    %c0_25 = arith.constant 0 : index
    %44 = vector.load %arg8[%c0_24, %c0_25] : memref<8x1xf32, #tpu.memory_space<vmem>>, vector<8x1xf32>
    tpu.vector_store %arg8[%c0_24, %c0_25], %43 {strides = array<i32>} : memref<8x1xf32, #tpu.memory_space<vmem>>, vector<8x1xf32>,
    return
  }
  func.func @transform_0(%arg0: i32) -> (i32, i32) {
    %c0_i32 = arith.constant 0 : i32
    %c0_i32_0 = arith.constant 0 : i32
    return %arg0, %c0_i32 : i32, i32
  }
  func.func @transform_1(%arg0: i32) -> (i32, i32, i32) {
    %c0_i32 = arith.constant 0 : i32
    %c0_i32_0 = arith.constant 0 : i32
    %c0_i32_1 = arith.constant 0 : i32
    return %arg0, %c0_i32, %c0_i32_0 : i32, i32, i32
  }
  func.func @transform_2(%arg0: i32) -> (i32, i32) {
    %c0_i32 = arith.constant 0 : i32
    %c0_i32_0 = arith.constant 0 : i32
    %c0_i32_1 = arith.constant 0 : i32
    return %c0_i32, %c0_i32_0 : i32, i32
  }
  func.func @transform_3(%arg0: i32) -> (i32, i32) {
    %c0_i32 = arith.constant 0 : i32
    %c0_i32_0 = arith.constant 0 : i32
    %c0_i32_1 = arith.constant 0 : i32
    return %c0_i32, %c0_i32_0 : i32, i32
  }
  func.func @transform_4(%arg0: i32) -> (i32, i32) {
    %c0_i32 = arith.constant 0 : i32
    %c0_i32_0 = arith.constant 0 : i32
    %c0_i32_1 = arith.constant 0 : i32
    return %c0_i32, %c0_i32_0 : i32, i32
  }
  func.func @transform_5(%arg0: i32) -> (i32, i32) {
    %c0_i32 = arith.constant 0 : i32
    %c0_i32_0 = arith.constant 0 : i32
    %c0_i32_1 = arith.constant 0 : i32
    return %c0_i32, %c0_i32_0 : i32, i32
  }
  func.func @transform_6(%arg0: i32) -> (i32, i32) {
    %c0_i32 = arith.constant 0 : i32
    %c0_i32_0 = arith.constant 0 : i32
    %c0_i32_1 = arith.constant 0 : i32
    return %c0_i32, %c0_i32_0 : i32, i32
  }
  func.func @transform_7(%arg0: i32) -> (i32, i32) {
    %c0_i32 = arith.constant 0 : i32
    %c0_i32_0 = arith.constant 0 : i32
    return %arg0, %c0_i32 : i32, i32
  }
}

</mosaic_0001>

<llo_original>
// kernel: tpu_custom_call.1
$region0: #{tpu_custom_call.1}
  #allocation0 [shape = 'u32[]', space=smem, size = 0x4, offset = 0x4, fixed_abs, tag = 'smem constant byte address 0x4 - core index']
  #allocation1 [shape = 'u32[72,128]{1,0:T(1,128)}', space=vmem, size = 0x9000, scoped, tag = 'internal scratch']
  %s0 = inlined_call_operand.vmem [shape: f32[256,8], index: 0, kind: input, shape index: {}]
  %s1 = inlined_call_operand.vmem [shape: f32[2,128,128], index: 1, kind: input, shape index: {}]
  %s2 = inlined_call_operand.vmem [shape: f32[8,128], index: 2, kind: input, shape index: {}]
  %s3 = inlined_call_operand.vmem [shape: f32[128,128], index: 3, kind: input, shape index: {}]
  %s4 = inlined_call_operand.vmem [shape: f32[128,64], index: 4, kind: input, shape index: {}]
  %s5 = inlined_call_operand.vmem [shape: f32[64,1], index: 5, kind: input, shape index: {}]
  %s6 = inlined_call_operand.vmem [shape: f32[4,128], index: 6, kind: input, shape index: {}]
  %s7 = inlined_call_operand.vmem [shape: f32[16,1], index: 7, kind: output, shape index: {}]
  %s8 = sld [smem:[#allocation0]]
  $region61: #{tpu_custom_call.1} parent=0
    _
  %s10 = ssub.s32 1, %s8
  %s11 = scalar_select 0, %s10, %s8
  loop: start=0, step=1, limit=4
  $region2: #{tpu_custom_call.1} parent=0 // loop_pre_header
    _
  $region3: #{tpu_custom_call.1} parent=0 // loop_header
    %s13 = sphi 0, %s17
    %p14 = scmp.ge.s32.totalorder %s13, 4
    %s23 = sphi 0, %s25
    %s26 = sphi 0, %s23
    %s27 = sphi 0, %s26
    %s43 = sphi 0, %s27
    %s49 = sphi 0, %s51
    %s52 = sphi 0, %s49
    %s53 = sphi 0, %s52
    %s69 = sphi 0, %s53
    %s73 = sphi 0, %s73
    %s75 = sphi 0, %s73
    %s76 = sphi 0, %s75
    %s90 = sphi 0, %s76
    %s94 = sphi 0, %s94
    %s96 = sphi 0, %s94
    %s97 = sphi 0, %s96
    %s111 = sphi 0, %s97
    %s115 = sphi 0, %s115
    %s117 = sphi 0, %s115
    %s118 = sphi 0, %s117
    %s132 = sphi 0, %s118
    %s136 = sphi 0, %s136
    %s138 = sphi 0, %s136
    %s139 = sphi 0, %s138
    %s153 = sphi 0, %s139
    %s157 = sphi 0, %s157
    %s159 = sphi 0, %s157
    %s160 = sphi 0, %s159
    %s174 = sphi 0, %s160
    %s180 = sphi 0, %s182
    %s183 = sphi 0, %s180
    %s184 = sphi 0, %s183
    %s200 = sphi 0, %s184
  $region4: #{tpu_custom_call.1} parent=0 // loop_header_branch
    %16 = sbr.rel (%p14) target = $region8
  $region5: #{tpu_custom_call.1} parent=0 // loop_body
    %s18 = ssub.s32 %s13, 1
    %s19 = ssub.s32 %s13, 2
    %s20 = sadd.s32 %s13, 1
    %s21 = ssub.s32 %s13, %s20
    %p22 = scmp.eq.s32.totalorder %s21, 0
    %s24 = sadd.s32 %s23, 1
    %s25 = scalar_select %p22, %s23, %s24
    %p28 = pneg %p22
    %p29 = scmp.eq.s32.totalorder %s13, 1
    %p30 = por %p28, %p29
    %p31 = scmp.ne.s32.totalorder %s23, %s26
    %p32 = scmp.eq.s32.totalorder %s13, 0
    %p33 = por %p31, %p32
    %p34 = scmp.ne.s32.totalorder %s23, %s26
    %p35 = scmp.eq.s32.totalorder %s18, 1
    %p36 = por %p34, %p35
    %p37 = scmp.ne.s32.totalorder %s26, %s27
    %p38 = scmp.eq.s32.totalorder %s18, 0
    %p39 = por %p37, %p38
    %p40 = scmp.ne.s32.totalorder %s26, %s27
    %p41 = scmp.eq.s32.totalorder %s19, 1
    %p42 = por %p40, %p41
    %p44 = scmp.ne.s32.totalorder %s27, %s43
    %p45 = scmp.eq.s32.totalorder %s19, 0
    %p46 = por %p44, %p45
    %s47 = ssub.s32 %s13, %s20
    %p48 = scmp.eq.s32.totalorder %s47, 0
    %s50 = sadd.s32 %s49, 1
    %s51 = scalar_select %p48, %s49, %s50
    %p54 = pneg %p48
    %p55 = scmp.eq.s32.totalorder %s13, 1
    %p56 = por %p54, %p55
    %p57 = scmp.ne.s32.totalorder %s49, %s52
    %p58 = scmp.eq.s32.totalorder %s13, 0
    %p59 = por %p57, %p58
    %p60 = scmp.ne.s32.totalorder %s49, %s52
    %p61 = scmp.eq.s32.totalorder %s18, 1
    %p62 = por %p60, %p61
    %p63 = scmp.ne.s32.totalorder %s52, %s53
    %p64 = scmp.eq.s32.totalorder %s18, 0
    %p65 = por %p63, %p64
    %p66 = scmp.ne.s32.totalorder %s52, %s53
    %p67 = scmp.eq.s32.totalorder %s19, 1
    %p68 = por %p66, %p67
    %p70 = scmp.ne.s32.totalorder %s53, %s69
    %p71 = scmp.eq.s32.totalorder %s19, 0
    %p72 = por %p70, %p71
    %s74 = sadd.s32 %s73, 1
    %p77 = scmp.eq.s32.totalorder %s13, 1
    %p78 = scmp.ne.s32.totalorder %s73, %s75
    %p79 = scmp.eq.s32.totalorder %s13, 0
    %p80 = por %p78, %p79
    %p81 = scmp.ne.s32.totalorder %s73, %s75
    %p82 = scmp.eq.s32.totalorder %s18, 1
    %p83 = por %p81, %p82
    %p84 = scmp.ne.s32.totalorder %s75, %s76
    %p85 = scmp.eq.s32.totalorder %s18, 0
    %p86 = por %p84, %p85
    %p87 = scmp.ne.s32.totalorder %s75, %s76
    %p88 = scmp.eq.s32.totalorder %s19, 1
    %p89 = por %p87, %p88
    %p91 = scmp.ne.s32.totalorder %s76, %s90
    %p92 = scmp.eq.s32.totalorder %s19, 0
    %p93 = por %p91, %p92
    %s95 = sadd.s32 %s94, 1
    %p98 = scmp.eq.s32.totalorder %s13, 1
    %p99 = scmp.ne.s32.totalorder %s94, %s96
    %p100 = scmp.eq.s32.totalorder %s13, 0
    %p101 = por %p99, %p100
    %p102 = scmp.ne.s32.totalorder %s94, %s96
    %p103 = scmp.eq.s32.totalorder %s18, 1
    %p104 = por %p102, %p103
    %p105 = scmp.ne.s32.totalorder %s96, %s97
    %p106 = scmp.eq.s32.totalorder %s18, 0
    %p107 = por %p105, %p106
    %p108 = scmp.ne.s32.totalorder %s96, %s97
    %p109 = scmp.eq.s32.totalorder %s19, 1
    %p110 = por %p108, %p109
    %p112 = scmp.ne.s32.totalorder %s97, %s111
    %p113 = scmp.eq.s32.totalorder %s19, 0
    %p114 = por %p112, %p113
    %s116 = sadd.s32 %s115, 1
    %p119 = scmp.eq.s32.totalorder %s13, 1
    %p120 = scmp.ne.s32.totalorder %s115, %s117
    %p121 = scmp.eq.s32.totalorder %s13, 0
    %p122 = por %p120, %p121
    %p123 = scmp.ne.s32.totalorder %s115, %s117
    %p124 = scmp.eq.s32.totalorder %s18, 1
    %p125 = por %p123, %p124
    %p126 = scmp.ne.s32.totalorder %s117, %s118
    %p127 = scmp.eq.s32.totalorder %s18, 0
    %p128 = por %p126, %p127
    %p129 = scmp.ne.s32.totalorder %s117, %s118
    %p130 = scmp.eq.s32.totalorder %s19, 1
    %p131 = por %p129, %p130
    %p133 = scmp.ne.s32.totalorder %s118, %s132
    %p134 = scmp.eq.s32.totalorder %s19, 0
    %p135 = por %p133, %p134
    %s137 = sadd.s32 %s136, 1
    %p140 = scmp.eq.s32.totalorder %s13, 1
    %p141 = scmp.ne.s32.totalorder %s136, %s138
    %p142 = scmp.eq.s32.totalorder %s13, 0
    %p143 = por %p141, %p142
    %p144 = scmp.ne.s32.totalorder %s136, %s138
    %p145 = scmp.eq.s32.totalorder %s18, 1
    %p146 = por %p144, %p145
    %p147 = scmp.ne.s32.totalorder %s138, %s139
    %p148 = scmp.eq.s32.totalorder %s18, 0
    %p149 = por %p147, %p148
    %p150 = scmp.ne.s32.totalorder %s138, %s139
    %p151 = scmp.eq.s32.totalorder %s19, 1
    %p152 = por %p150, %p151
    %p154 = scmp.ne.s32.totalorder %s139, %s153
    %p155 = scmp.eq.s32.totalorder %s19, 0
    %p156 = por %p154, %p155
    %s158 = sadd.s32 %s157, 1
    %p161 = scmp.eq.s32.totalorder %s13, 1
    %p162 = scmp.ne.s32.totalorder %s157, %s159
    %p163 = scmp.eq.s32.totalorder %s13, 0
    %p164 = por %p162, %p163
    %p165 = scmp.ne.s32.totalorder %s157, %s159
    %p166 = scmp.eq.s32.totalorder %s18, 1
    %p167 = por %p165, %p166
    %p168 = scmp.ne.s32.totalorder %s159, %s160
    %p169 = scmp.eq.s32.totalorder %s18, 0
    %p170 = por %p168, %p169
    %p171 = scmp.ne.s32.totalorder %s159, %s160
    %p172 = scmp.eq.s32.totalorder %s19, 1
    %p173 = por %p171, %p172
    %p175 = scmp.ne.s32.totalorder %s160, %s174
    %p176 = scmp.eq.s32.totalorder %s19, 0
    %p177 = por %p175, %p176
    %s178 = ssub.s32 %s13, %s20
    %p179 = scmp.eq.s32.totalorder %s178, 0
    %s181 = sadd.s32 %s180, 1
    %s182 = scalar_select %p179, %s180, %s181
    %p185 = pneg %p179
    %p186 = scmp.eq.s32.totalorder %s13, 1
    %p187 = por %p185, %p186
    %p188 = scmp.ne.s32.totalorder %s180, %s183
    %p189 = scmp.eq.s32.totalorder %s13, 0
    %p190 = por %p188, %p189
    %p191 = scmp.ne.s32.totalorder %s180, %s183
    %p192 = scmp.eq.s32.totalorder %s18, 1
    %p193 = por %p191, %p192
    %p194 = scmp.ne.s32.totalorder %s183, %s184
    %p195 = scmp.eq.s32.totalorder %s18, 0
    %p196 = por %p194, %p195
    %p197 = scmp.ne.s32.totalorder %s183, %s184
    %p198 = scmp.eq.s32.totalorder %s19, 1
    %p199 = por %p197, %p198
    %p201 = scmp.ne.s32.totalorder %s184, %s200
    %p202 = scmp.eq.s32.totalorder %s19, 0
    %p203 = por %p201, %p202
    %p204 = scmp.le.s32.totalorder 1, %s13
    %p205 = scmp.lt.s32.totalorder %s13, 3
    %p206 = pnand %p204, %p205
    %p207 = pneg %p206
    // Predicated region
    $region9: #{tpu_custom_call.1} parent=5 // pred_check
      _
    $region10: #{tpu_custom_call.1} parent=5 // pred_check_branch
      %209 = sbr.rel (%p206) target = $region12
    $region11: #{tpu_custom_call.1} parent=5 // pred_region
      %s210 = ssub.s32 %s13, 1
      // Predicated region
      $region13: #{tpu_custom_call.1} parent=11 // pred_check
        %p211 = pneg %p86
      $region14: #{tpu_custom_call.1} parent=11 // pred_check_branch
        %213 = sbr.rel (%p211) target = $region16
      $region15: #{tpu_custom_call.1} parent=11 // pred_region
        _
      $region16: #{tpu_custom_call.1} parent=11 // pred_fallthru
        _
      // Predicated region
      $region17: #{tpu_custom_call.1} parent=11 // pred_check
        %p214 = pneg %p107
      $region18: #{tpu_custom_call.1} parent=11 // pred_check_branch
        %216 = sbr.rel (%p214) target = $region20
      $region19: #{tpu_custom_call.1} parent=11 // pred_region
        _
      $region20: #{tpu_custom_call.1} parent=11 // pred_fallthru
        _
      // Predicated region
      $region21: #{tpu_custom_call.1} parent=11 // pred_check
        %p217 = pneg %p128
      $region22: #{tpu_custom_call.1} parent=11 // pred_check_branch
        %219 = sbr.rel (%p217) target = $region24
      $region23: #{tpu_custom_call.1} parent=11 // pred_region
        _
      $region24: #{tpu_custom_call.1} parent=11 // pred_fallthru
        _
      // Predicated region
      $region25: #{tpu_custom_call.1} parent=11 // pred_check
        %p220 = pneg %p149
      $region26: #{tpu_custom_call.1} parent=11 // pred_check_branch
        %222 = sbr.rel (%p220) target = $region28
      $region27: #{tpu_custom_call.1} parent=11 // pred_region
        _
      $region28: #{tpu_custom_call.1} parent=11 // pred_fallthru
        _
      // Predicated region
      $region29: #{tpu_custom_call.1} parent=11 // pred_check
        %p223 = pneg %p170
      $region30: #{tpu_custom_call.1} parent=11 // pred_check_branch
        %225 = sbr.rel (%p223) target = $region32
      $region31: #{tpu_custom_call.1} parent=11 // pred_region
        _
      $region32: #{tpu_custom_call.1} parent=11 // pred_fallthru
        _
    $region12: #{tpu_custom_call.1} parent=5 // pred_fallthru
      _
    %p226 = scmp.lt.s32.totalorder %s13, 2
    // Predicated region
    $region33: #{tpu_custom_call.1} parent=5 // pred_check
      %p227 = pneg %p226
    $region34: #{tpu_custom_call.1} parent=5 // pred_check_branch
      %229 = sbr.rel (%p227) target = $region36
    $region35: #{tpu_custom_call.1} parent=5 // pred_region
      // Predicated region
      $region37: #{tpu_custom_call.1} parent=35 // pred_check
        %p230 = pneg %p33
      $region38: #{tpu_custom_call.1} parent=35 // pred_check_branch
        %232 = sbr.rel (%p230) target = $region40
      $region39: #{tpu_custom_call.1} parent=35 // pred_region
        %s233 = smul.u32 16, %s13
        %p234 = scmp.lt.s32.totalorder %s233, 31
        %s235 = scalar_select %p234, %s233, 31
        %s236 = smul.addr %s235, 8
        %s237 = scalar_lea.vmem %s0, %s236
        %s238 = smul.u32 16, %s13
      $region40: #{tpu_custom_call.1} parent=35 // pred_fallthru
        _
      // Predicated region
      $region41: #{tpu_custom_call.1} parent=35 // pred_check
        %p239 = pneg %p59
      $region42: #{tpu_custom_call.1} parent=35 // pred_check_branch
        %241 = sbr.rel (%p239) target = $region44
      $region43: #{tpu_custom_call.1} parent=35 // pred_region
        %p242 = scmp.lt.s32.totalorder %s13, 1
        %s243 = scalar_select %p242, %s13, 1
        %s244 = smul.addr %s243, 16
        %s245 = smul.addr %s244, 8
        %s246 = scalar_lea.vmem %s1, %s245
      $region44: #{tpu_custom_call.1} parent=35 // pred_fallthru
        _
    $region36: #{tpu_custom_call.1} parent=5 // pred_fallthru
      _
    %p247 = scmp.le.s32.totalorder 1, %s13
    %p248 = scmp.lt.s32.totalorder %s13, 3
    %p249 = pnand %p247, %p248
    %p250 = pneg %p249
    // Predicated region
    $region45: #{tpu_custom_call.1} parent=5 // pred_check
      _
    $region46: #{tpu_custom_call.1} parent=5 // pred_check_branch
      %252 = sbr.rel (%p249) target = $region48
    $region47: #{tpu_custom_call.1} parent=5 // pred_region
      %s253 = ssub.s32 %s13, 1
      %s254 = smul.u32 16, %s18
      %p255 = scmp.lt.s32.totalorder %s254, 31
      %s256 = scalar_select %p255, %s254, 31
      %s257 = smul.addr %s256, 8
      %s258 = scalar_lea.vmem %s0, %s257
      %p259 = pneg %p39
      %p260 = pneg %p36
      %p261 = scmp.lt.s32.totalorder %s18, 1
      %s262 = scalar_select %p261, %s18, 1
      %s263 = smul.addr %s262, 16
      %s264 = smul.addr %s263, 8
      %s265 = scalar_lea.vmem %s1, %s264
      %p266 = pneg %p65
      %p267 = pneg %p62
      %p268 = pneg %p86
      %p269 = pneg %p83
      %p270 = pneg %p107
      %p271 = pneg %p104
      %p272 = pneg %p128
      %p273 = pneg %p125
      %p274 = pneg %p149
      %p275 = pneg %p146
      %p276 = pneg %p170
      %p277 = pneg %p167
      %p278 = pneg %p196
      %p279 = pneg %p193
      %p280 = scmp.lt.s32.totalorder %s18, 1
      %s281 = scalar_select %p280, %s18, 1
      %s282 = smul.addr %s281, 8
      %s283 = scalar_lea.vmem %s7, %s282
      %s284 = smul.u32 16, %s18
      %p285 = scmp.lt.s32.totalorder %s284, 31
      %s286 = scalar_select %p285, %s284, 31
      %s287 = smul.addr %s286, 8
      %s288 = scalar_lea.vmem %s0, %s287
      %s289 = smul.u32 16, %s18
      %p290 = scmp.lt.s32.totalorder %s18, 1
      %s291 = scalar_select %p290, %s18, 1
      %s292 = smul.addr %s291, 16
      %s293 = smul.addr %s292, 8
      %s294 = scalar_lea.vmem %s1, %s293
      %p295 = scmp.lt.s32.totalorder %s18, 1
      %s296 = scalar_select %p295, %s18, 1
      %s297 = smul.addr %s296, 8
      %s298 = scalar_lea.vmem %s7, %s297
      %v299 = vld [vmem:[%s288] sm:$0xff]
      %v300 = vld [vmem:[%s288 + $0x8] sm:$0xff]
      %v301 = vld [vmem:[%s288 + $0x10] sm:$0xff]
      %v302 = vld [vmem:[%s288 + $0x18] sm:$0xff]
      %v303 = vld [vmem:[%s288 + $0x20] sm:$0xff]
      %v304 = vld [vmem:[%s288 + $0x28] sm:$0xff]
      %v305 = vld [vmem:[%s288 + $0x30] sm:$0xff]
      %v306 = vld [vmem:[%s288 + $0x38] sm:$0xff]
      %v307 = vld [vmem:[%s288 + $0x40] sm:$0xff]
      %v308 = vld [vmem:[%s288 + $0x48] sm:$0xff]
      %v309 = vld [vmem:[%s288 + $0x50] sm:$0xff]
      %v310 = vld [vmem:[%s288 + $0x58] sm:$0xff]
      %v311 = vld [vmem:[%s288 + $0x60] sm:$0xff]
      %v312 = vld [vmem:[%s288 + $0x68] sm:$0xff]
      %v313 = vld [vmem:[%s288 + $0x70] sm:$0xff]
      %v314 = vld [vmem:[%s288 + $0x78] sm:$0xff]
      %v315 = vld [vmem:[%s294] sm:$0xff]
      %v316 = vld [vmem:[%s294 + $0x8] sm:$0xff]
      %v317 = vld [vmem:[%s294 + $0x10] sm:$0xff]
      %v318 = vld [vmem:[%s294 + $0x18] sm:$0xff]
      %v319 = vld [vmem:[%s294 + $0x20] sm:$0xff]
      %v320 = vld [vmem:[%s294 + $0x28] sm:$0xff]
      %v321 = vld [vmem:[%s294 + $0x30] sm:$0xff]
      %v322 = vld [vmem:[%s294 + $0x38] sm:$0xff]
      %v323 = vld [vmem:[%s294 + $0x40] sm:$0xff]
      %v324 = vld [vmem:[%s294 + $0x48] sm:$0xff]
      %v325 = vld [vmem:[%s294 + $0x50] sm:$0xff]
      %v326 = vld [vmem:[%s294 + $0x58] sm:$0xff]
      %v327 = vld [vmem:[%s294 + $0x60] sm:$0xff]
      %v328 = vld [vmem:[%s294 + $0x68] sm:$0xff]
      %v329 = vld [vmem:[%s294 + $0x70] sm:$0xff]
      %v330 = vld [vmem:[%s294 + $0x78] sm:$0xff]
      %v331 = vld [vmem:[%s2] sm:$0xff]
      %v332 = vld [vmem:[%s3] sm:$0xff]
      %v333 = vld [vmem:[%s3 + $0x8] sm:$0xff]
      %v334 = vld [vmem:[%s3 + $0x10] sm:$0xff]
      %v335 = vld [vmem:[%s3 + $0x18] sm:$0xff]
      %v336 = vld [vmem:[%s3 + $0x20] sm:$0xff]
      %v337 = vld [vmem:[%s3 + $0x28] sm:$0xff]
      %v338 = vld [vmem:[%s3 + $0x30] sm:$0xff]
      %v339 = vld [vmem:[%s3 + $0x38] sm:$0xff]
      %v340 = vld [vmem:[%s3 + $0x40] sm:$0xff]
      %v341 = vld [vmem:[%s3 + $0x48] sm:$0xff]
      %v342 = vld [vmem:[%s3 + $0x50] sm:$0xff]
      %v343 = vld [vmem:[%s3 + $0x58] sm:$0xff]
      %v344 = vld [vmem:[%s3 + $0x60] sm:$0xff]
      %v345 = vld [vmem:[%s3 + $0x68] sm:$0xff]
      %v346 = vld [vmem:[%s3 + $0x70] sm:$0xff]
      %v347 = vld [vmem:[%s3 + $0x78] sm:$0xff]
      %v348 = vld [vmem:[%s4] sm:$0xff]
      %v349 = vld [vmem:[%s4 + $0x8] sm:$0xff]
      %v350 = vld [vmem:[%s4 + $0x10] sm:$0xff]
      %v351 = vld [vmem:[%s4 + $0x18] sm:$0xff]
      %v352 = vld [vmem:[%s4 + $0x20] sm:$0xff]
      %v353 = vld [vmem:[%s4 + $0x28] sm:$0xff]
      %v354 = vld [vmem:[%s4 + $0x30] sm:$0xff]
      %v355 = vld [vmem:[%s4 + $0x38] sm:$0xff]
      %v356 = vld [vmem:[%s4 + $0x40] sm:$0xff]
      %v357 = vld [vmem:[%s4 + $0x48] sm:$0xff]
      %v358 = vld [vmem:[%s4 + $0x50] sm:$0xff]
      %v359 = vld [vmem:[%s4 + $0x58] sm:$0xff]
      %v360 = vld [vmem:[%s4 + $0x60] sm:$0xff]
      %v361 = vld [vmem:[%s4 + $0x68] sm:$0xff]
      %v362 = vld [vmem:[%s4 + $0x70] sm:$0xff]
      %v363 = vld [vmem:[%s4 + $0x78] sm:$0xff]
      %v364 = vld [vmem:[%s5] sm:$0xff]
      %v365 = vld [vmem:[%s5 + $0x8] sm:$0xff]
      %v366 = vld [vmem:[%s5 + $0x10] sm:$0xff]
      %v367 = vld [vmem:[%s5 + $0x18] sm:$0xff]
      %v368 = vld [vmem:[%s5 + $0x20] sm:$0xff]
      %v369 = vld [vmem:[%s5 + $0x28] sm:$0xff]
      %v370 = vld [vmem:[%s5 + $0x30] sm:$0xff]
      %v371 = vld [vmem:[%s5 + $0x38] sm:$0xff]
      %v372 = vld [vmem:[%s6] sm:$0xf]
      %373 = vmatpush.msra.mxu0 %v314
      %374 = vmatpush.msra.mxu0 %v313
      %375 = vmatpush.msra.mxu0 %v312
      %376 = vmatpush.msra.mxu0 %v311
      %377 = vmatpush.msra.mxu0 %v310
      %378 = vmatpush.msra.mxu0 %v309
      %379 = vmatpush.msra.mxu0 %v308
      %380 = vmatpush.msra.mxu0 %v307
      %381 = vmatpush.msra.mxu0 %v306
      %382 = vmatpush.msra.mxu0 %v305
      %383 = vmatpush.msra.mxu0 %v304
      %384 = vmatpush.msra.mxu0 %v303
      %385 = vmatpush.msra.mxu0 %v302
      %386 = vmatpush.msra.mxu0 %v301
      %387 = vmatpush.msra.mxu0 %v300
      %388 = vmatpush.msra.mxu0 %v299
      %389 = vmatmul.f32.gmra.mxu0 %v315
      %v390 = vpop.f32.mrf.mxu0
      %v391 = vadd.f32 0.0, %v390
      %392 = vmatmul.f32.gmra.mxu0 %v316
      %v393 = vpop.f32.mrf.mxu0
      %v394 = vadd.f32 0.0, %v393
      %395 = vmatmul.f32.gmra.mxu0 %v317
      %v396 = vpop.f32.mrf.mxu0
      %v397 = vadd.f32 0.0, %v396
      %398 = vmatmul.f32.gmra.mxu0 %v318
      %v399 = vpop.f32.mrf.mxu0
      %v400 = vadd.f32 0.0, %v399
      %401 = vmatmul.f32.gmra.mxu0 %v319
      %v402 = vpop.f32.mrf.mxu0
      %v403 = vadd.f32 0.0, %v402
      %404 = vmatmul.f32.gmra.mxu0 %v320
      %v405 = vpop.f32.mrf.mxu0
      %v406 = vadd.f32 0.0, %v405
      %407 = vmatmul.f32.gmra.mxu0 %v321
      %v408 = vpop.f32.mrf.mxu0
      %v409 = vadd.f32 0.0, %v408
      %410 = vmatmul.f32.gmra.mxu0 %v322
      %v411 = vpop.f32.mrf.mxu0
      %v412 = vadd.f32 0.0, %v411
      %413 = vmatmul.f32.gmra.mxu0 %v323
      %v414 = vpop.f32.mrf.mxu0
      %v415 = vadd.f32 0.0, %v414
      %416 = vmatmul.f32.gmra.mxu0 %v324
      %v417 = vpop.f32.mrf.mxu0
      %v418 = vadd.f32 0.0, %v417
      %419 = vmatmul.f32.gmra.mxu0 %v325
      %v420 = vpop.f32.mrf.mxu0
      %v421 = vadd.f32 0.0, %v420
      %422 = vmatmul.f32.gmra.mxu0 %v326
      %v423 = vpop.f32.mrf.mxu0
      %v424 = vadd.f32 0.0, %v423
      %425 = vmatmul.f32.gmra.mxu0 %v327
      %v426 = vpop.f32.mrf.mxu0
      %v427 = vadd.f32 0.0, %v426
      %428 = vmatmul.f32.gmra.mxu0 %v328
      %v429 = vpop.f32.mrf.mxu0
      %v430 = vadd.f32 0.0, %v429
      %431 = vmatmul.f32.gmra.mxu0 %v329
      %v432 = vpop.f32.mrf.mxu0
      %v433 = vadd.f32 0.0, %v432
      %434 = vmatmul.f32.gmra.mxu0 %v330
      %v435 = vpop.f32.mrf.mxu0
      %v436 = vadd.f32 0.0, %v435
      %437 = vdwg.mxu0
      %v438 = vperm.slane %v372, 0
      %vm439 = vcmask 64512
      %v441 = vsel %vm439, %v391, 0
      %v444 = vsel %vm439, %v394, 0
      %v447 = vsel %vm439, %v397, 0
      %v450 = vsel %vm439, %v400, 0
      %v453 = vsel %vm439, %v403, 0
      %v456 = vsel %vm439, %v406, 0
      %v459 = vsel %vm439, %v409, 0
      %v462 = vsel %vm439, %v412, 0
      %v465 = vsel %vm439, %v415, 0
      %v468 = vsel %vm439, %v418, 0
      %v471 = vsel %vm439, %v421, 0
      %v474 = vsel %vm439, %v424, 0
      %v477 = vsel %vm439, %v427, 0
      %v480 = vsel %vm439, %v430, 0
      %v483 = vsel %vm439, %v433, 0
      %v486 = vsel %vm439, %v436, 0
      %488 = vmatpush.msra.mxu0 0.0
      %489 = vmatpush.msra.mxu0 0.0
      %490 = vmatpush.msra.mxu0 0.0
      %491 = vmatpush.msra.mxu0 0.0
      %492 = vmatpush.msra.mxu0 0.0
      %493 = vmatpush.msra.mxu0 0.0
      %494 = vmatpush.msra.mxu0 0.0
      %495 = vmatpush.msra.mxu0 0.0
      %496 = vmatpush.msra.mxu0 0.0
      %497 = vmatpush.msra.mxu0 0.0
      %498 = vmatpush.msra.mxu0 0.0
      %499 = vmatpush.msra.mxu0 0.0
      %500 = vmatpush.msra.mxu0 0.0
      %501 = vmatpush.msra.mxu0 0.0
      %502 = vmatpush.msra.mxu0 0.0
      %503 = vmatpush.msra.mxu0 %v331
      %504 = vmatmul.f32.gmra.mxu0 %v441
      %v505 = vpop.f32.mrf.mxu0
      %v506 = vadd.f32 %v438, %v505
      %507 = vmatmul.f32.gmra.mxu0 %v444
      %v508 = vpop.f32.mrf.mxu0
      %v509 = vadd.f32 %v438, %v508
      %510 = vmatmul.f32.gmra.mxu0 %v447
      %v511 = vpop.f32.mrf.mxu0
      %v512 = vadd.f32 %v438, %v511
      %513 = vmatmul.f32.gmra.mxu0 %v450
      %v514 = vpop.f32.mrf.mxu0
      %v515 = vadd.f32 %v438, %v514
      %516 = vmatmul.f32.gmra.mxu0 %v453
      %v517 = vpop.f32.mrf.mxu0
      %v518 = vadd.f32 %v438, %v517
      %519 = vmatmul.f32.gmra.mxu0 %v456
      %v520 = vpop.f32.mrf.mxu0
      %v521 = vadd.f32 %v438, %v520
      %522 = vmatmul.f32.gmra.mxu0 %v459
      %v523 = vpop.f32.mrf.mxu0
      %v524 = vadd.f32 %v438, %v523
      %525 = vmatmul.f32.gmra.mxu0 %v462
      %v526 = vpop.f32.mrf.mxu0
      %v527 = vadd.f32 %v438, %v526
      %528 = vmatmul.f32.gmra.mxu0 %v465
      %v529 = vpop.f32.mrf.mxu0
      %v530 = vadd.f32 %v438, %v529
      %531 = vmatmul.f32.gmra.mxu0 %v468
      %v532 = vpop.f32.mrf.mxu0
      %v533 = vadd.f32 %v438, %v532
      %534 = vmatmul.f32.gmra.mxu0 %v471
      %v535 = vpop.f32.mrf.mxu0
      %v536 = vadd.f32 %v438, %v535
      %537 = vmatmul.f32.gmra.mxu0 %v474
      %v538 = vpop.f32.mrf.mxu0
      %v539 = vadd.f32 %v438, %v538
      %540 = vmatmul.f32.gmra.mxu0 %v477
      %v541 = vpop.f32.mrf.mxu0
      %v542 = vadd.f32 %v438, %v541
      %543 = vmatmul.f32.gmra.mxu0 %v480
      %v544 = vpop.f32.mrf.mxu0
      %v545 = vadd.f32 %v438, %v544
      %546 = vmatmul.f32.gmra.mxu0 %v483
      %v547 = vpop.f32.mrf.mxu0
      %v548 = vadd.f32 %v438, %v547
      %549 = vmatmul.f32.gmra.mxu0 %v486
      %v550 = vpop.f32.mrf.mxu0
      %v551 = vadd.f32 %v438, %v550
      %552 = vdwg.mxu0
      %v553 = vmax.f32 %v506, 0.0
      %v554 = vmax.f32 %v509, 0.0
      %v555 = vmax.f32 %v512, 0.0
      %v556 = vmax.f32 %v515, 0.0
      %v557 = vmax.f32 %v518, 0.0
      %v558 = vmax.f32 %v521, 0.0
      %v559 = vmax.f32 %v524, 0.0
      %v560 = vmax.f32 %v527, 0.0
      %v561 = vmax.f32 %v530, 0.0
      %v562 = vmax.f32 %v533, 0.0
      %v563 = vmax.f32 %v536, 0.0
      %v564 = vmax.f32 %v539, 0.0
      %v565 = vmax.f32 %v542, 0.0
      %v566 = vmax.f32 %v545, 0.0
      %v567 = vmax.f32 %v548, 0.0
      %v568 = vmax.f32 %v551, 0.0
      %569 = vmatpush.msra.mxu0 %v347
      %570 = vmatpush.msra.mxu0 %v346
      %571 = vmatpush.msra.mxu0 %v345
      %572 = vmatpush.msra.mxu0 %v344
      %573 = vmatpush.msra.mxu0 %v343
      %574 = vmatpush.msra.mxu0 %v342
      %575 = vmatpush.msra.mxu0 %v341
      %576 = vmatpush.msra.mxu0 %v340
      %577 = vmatpush.msra.mxu0 %v339
      %578 = vmatpush.msra.mxu0 %v338
      %579 = vmatpush.msra.mxu0 %v337
      %580 = vmatpush.msra.mxu0 %v336
      %581 = vmatpush.msra.mxu0 %v335
      %582 = vmatpush.msra.mxu0 %v334
      %583 = vmatpush.msra.mxu0 %v333
      %584 = vmatpush.msra.mxu0 %v332
      %585 = vmatmul.f32.gmra.mxu0 %v553
      %v586 = vpop.f32.mrf.mxu0
      %v587 = vadd.f32 0.0, %v586
      %588 = vmatmul.f32.gmra.mxu0 %v554
      %v589 = vpop.f32.mrf.mxu0
      %v590 = vadd.f32 0.0, %v589
      %591 = vmatmul.f32.gmra.mxu0 %v555
      %v592 = vpop.f32.mrf.mxu0
      %v593 = vadd.f32 0.0, %v592
      %594 = vmatmul.f32.gmra.mxu0 %v556
      %v595 = vpop.f32.mrf.mxu0
      %v596 = vadd.f32 0.0, %v595
      %597 = vmatmul.f32.gmra.mxu0 %v557
      %v598 = vpop.f32.mrf.mxu0
      %v599 = vadd.f32 0.0, %v598
      %600 = vmatmul.f32.gmra.mxu0 %v558
      %v601 = vpop.f32.mrf.mxu0
      %v602 = vadd.f32 0.0, %v601
      %603 = vmatmul.f32.gmra.mxu0 %v559
      %v604 = vpop.f32.mrf.mxu0
      %v605 = vadd.f32 0.0, %v604
      %606 = vmatmul.f32.gmra.mxu0 %v560
      %v607 = vpop.f32.mrf.mxu0
      %v608 = vadd.f32 0.0, %v607
      %609 = vmatmul.f32.gmra.mxu0 %v561
      %v610 = vpop.f32.mrf.mxu0
      %v611 = vadd.f32 0.0, %v610
      %612 = vmatmul.f32.gmra.mxu0 %v562
      %v613 = vpop.f32.mrf.mxu0
      %v614 = vadd.f32 0.0, %v613
      %615 = vmatmul.f32.gmra.mxu0 %v563
      %v616 = vpop.f32.mrf.mxu0
      %v617 = vadd.f32 0.0, %v616
      %618 = vmatmul.f32.gmra.mxu0 %v564
      %v619 = vpop.f32.mrf.mxu0
      %v620 = vadd.f32 0.0, %v619
      %621 = vmatmul.f32.gmra.mxu0 %v565
      %v622 = vpop.f32.mrf.mxu0
      %v623 = vadd.f32 0.0, %v622
      %624 = vmatmul.f32.gmra.mxu0 %v566
      %v625 = vpop.f32.mrf.mxu0
      %v626 = vadd.f32 0.0, %v625
      %627 = vmatmul.f32.gmra.mxu0 %v567
      %v628 = vpop.f32.mrf.mxu0
      %v629 = vadd.f32 0.0, %v628
      %630 = vmatmul.f32.gmra.mxu0 %v568
      %v631 = vpop.f32.mrf.mxu0
      %v632 = vadd.f32 0.0, %v631
      %633 = vdwg.mxu0
      %v634 = vperm.slane %v372, 1
      %635 = vmatpush.msra.mxu0 %v632
      %636 = vmatpush.msra.mxu0 %v629
      %637 = vmatpush.msra.mxu0 %v626
      %638 = vmatpush.msra.mxu0 %v623
      %639 = vmatpush.msra.mxu0 %v620
      %640 = vmatpush.msra.mxu0 %v617
      %641 = vmatpush.msra.mxu0 %v614
      %642 = vmatpush.msra.mxu0 %v611
      %643 = vmatpush.msra.mxu0 %v608
      %644 = vmatpush.msra.mxu0 %v605
      %645 = vmatpush.msra.mxu0 %v602
      %646 = vmatpush.msra.mxu0 %v599
      %647 = vmatpush.msra.mxu0 %v596
      %648 = vmatpush.msra.mxu0 %v593
      %649 = vmatpush.msra.mxu0 %v590
      %650 = vmatpush.msra.mxu0 %v587
      %651 = vmatmul.f32.gmra.mxu0 %v315
      %v652 = vpop.f32.mrf.mxu0
      %v653 = vadd.f32 %v634, %v652
      %654 = vmatmul.f32.gmra.mxu0 %v316
      %v655 = vpop.f32.mrf.mxu0
      %v656 = vadd.f32 %v634, %v655
      %657 = vmatmul.f32.gmra.mxu0 %v317
      %v658 = vpop.f32.mrf.mxu0
      %v659 = vadd.f32 %v634, %v658
      %660 = vmatmul.f32.gmra.mxu0 %v318
      %v661 = vpop.f32.mrf.mxu0
      %v662 = vadd.f32 %v634, %v661
      %663 = vmatmul.f32.gmra.mxu0 %v319
      %v664 = vpop.f32.mrf.mxu0
      %v665 = vadd.f32 %v634, %v664
      %666 = vmatmul.f32.gmra.mxu0 %v320
      %v667 = vpop.f32.mrf.mxu0
      %v668 = vadd.f32 %v634, %v667
      %669 = vmatmul.f32.gmra.mxu0 %v321
      %v670 = vpop.f32.mrf.mxu0
      %v671 = vadd.f32 %v634, %v670
      %672 = vmatmul.f32.gmra.mxu0 %v322
      %v673 = vpop.f32.mrf.mxu0
      %v674 = vadd.f32 %v634, %v673
      %675 = vmatmul.f32.gmra.mxu0 %v323
      %v676 = vpop.f32.mrf.mxu0
      %v677 = vadd.f32 %v634, %v676
      %678 = vmatmul.f32.gmra.mxu0 %v324
      %v679 = vpop.f32.mrf.mxu0
      %v680 = vadd.f32 %v634, %v679
      %681 = vmatmul.f32.gmra.mxu0 %v325
      %v682 = vpop.f32.mrf.mxu0
      %v683 = vadd.f32 %v634, %v682
      %684 = vmatmul.f32.gmra.mxu0 %v326
      %v685 = vpop.f32.mrf.mxu0
      %v686 = vadd.f32 %v634, %v685
      %687 = vmatmul.f32.gmra.mxu0 %v327
      %v688 = vpop.f32.mrf.mxu0
      %v689 = vadd.f32 %v634, %v688
      %690 = vmatmul.f32.gmra.mxu0 %v328
      %v691 = vpop.f32.mrf.mxu0
      %v692 = vadd.f32 %v634, %v691
      %693 = vmatmul.f32.gmra.mxu0 %v329
      %v694 = vpop.f32.mrf.mxu0
      %v695 = vadd.f32 %v634, %v694
      %696 = vmatmul.f32.gmra.mxu0 %v330
      %v697 = vpop.f32.mrf.mxu0
      %v698 = vadd.f32 %v634, %v697
      %699 = vdwg.mxu0
      %v700 = vmax.f32 %v653, 0.0
      %v701 = vmax.f32 %v656, 0.0
      %v702 = vmax.f32 %v659, 0.0
      %v703 = vmax.f32 %v662, 0.0
      %v704 = vmax.f32 %v665, 0.0
      %v705 = vmax.f32 %v668, 0.0
      %v706 = vmax.f32 %v671, 0.0
      %v707 = vmax.f32 %v674, 0.0
      %v708 = vmax.f32 %v677, 0.0
      %v709 = vmax.f32 %v680, 0.0
      %v710 = vmax.f32 %v683, 0.0
      %v711 = vmax.f32 %v686, 0.0
      %v712 = vmax.f32 %v689, 0.0
      %v713 = vmax.f32 %v692, 0.0
      %v714 = vmax.f32 %v695, 0.0
      %v715 = vmax.f32 %v698, 0.0
      %v716 = vadd.f32 %v700, %v701
      %v717 = vrot.slane %v716, 4
      %v718 = vadd.f32 %v716, %v717
      %v719 = vrot.slane %v718, 2
      %v720 = vadd.f32 %v718, %v719
      %v721 = vrot.slane %v720, 1
      %v722 = vadd.f32 %v720, %v721
      %v723 = vadd.f32 %v702, %v703
      %v724 = vrot.slane %v723, 4
      %v725 = vadd.f32 %v723, %v724
      %v726 = vrot.slane %v725, 2
      %v727 = vadd.f32 %v725, %v726
      %v728 = vrot.slane %v727, 1
      %v729 = vadd.f32 %v727, %v728
      %v730 = vadd.f32 %v704, %v705
      %v731 = vrot.slane %v730, 4
      %v732 = vadd.f32 %v730, %v731
      %v733 = vrot.slane %v732, 2
      %v734 = vadd.f32 %v732, %v733
      %v735 = vrot.slane %v734, 1
      %v736 = vadd.f32 %v734, %v735
      %v737 = vadd.f32 %v706, %v707
      %v738 = vrot.slane %v737, 4
      %v739 = vadd.f32 %v737, %v738
      %v740 = vrot.slane %v739, 2
      %v741 = vadd.f32 %v739, %v740
      %v742 = vrot.slane %v741, 1
      %v743 = vadd.f32 %v741, %v742
      %v744 = vadd.f32 %v708, %v709
      %v745 = vrot.slane %v744, 4
      %v746 = vadd.f32 %v744, %v745
      %v747 = vrot.slane %v746, 2
      %v748 = vadd.f32 %v746, %v747
      %v749 = vrot.slane %v748, 1
      %v750 = vadd.f32 %v748, %v749
      %v751 = vadd.f32 %v710, %v711
      %v752 = vrot.slane %v751, 4
      %v753 = vadd.f32 %v751, %v752
      %v754 = vrot.slane %v753, 2
      %v755 = vadd.f32 %v753, %v754
      %v756 = vrot.slane %v755, 1
      %v757 = vadd.f32 %v755, %v756
      %v758 = vadd.f32 %v712, %v713
      %v759 = vrot.slane %v758, 4
      %v760 = vadd.f32 %v758, %v759
      %v761 = vrot.slane %v760, 2
      %v762 = vadd.f32 %v760, %v761
      %v763 = vrot.slane %v762, 1
      %v764 = vadd.f32 %v762, %v763
      %v765 = vadd.f32 %v714, %v715
      %v766 = vrot.slane %v765, 4
      %v767 = vadd.f32 %v765, %v766
      %v768 = vrot.slane %v767, 2
      %v769 = vadd.f32 %v767, %v768
      %v770 = vrot.slane %v769, 1
      %v771 = vadd.f32 %v769, %v770
      %v772 = vrcp.pop 16.0
      %v773 = vmul.f32 16.0, %v772
      %v774 = vsub.f32 1.0, %v773
      %v775 = vmul.f32 %v772, %v774
      %v776 = vadd.f32 %v772, %v775
      %vm777 = vweird.f32 %v772
      %v778 = vsel %vm777, %v772, %v776
      %v779 = vmul.f32 %v722, %v778
      %v780 = vmul.f32 %v729, %v778
      %v781 = vmul.f32 %v736, %v778
      %v782 = vmul.f32 %v743, %v778
      %v783 = vmul.f32 %v750, %v778
      %v784 = vmul.f32 %v757, %v778
      %v785 = vmul.f32 %v764, %v778
      %v786 = vmul.f32 %v771, %v778
      %v787 = vperm.slane %v372, 2
      %vm796 = vcmask 1041409
      %v797 = vsel %vm796, %v780, %v779
      %vm798 = vcmask 1042434
      %v799 = vsel %vm798, %v781, %v797
      %vm800 = vcmask 1043459
      %v801 = vsel %vm800, %v782, %v799
      %vm802 = vcmask 1044484
      %v803 = vsel %vm802, %v783, %v801
      %vm804 = vcmask 1045509
      %v805 = vsel %vm804, %v784, %v803
      %vm806 = vcmask 1046534
      %v807 = vsel %vm806, %v785, %v805
      %vm808 = vcmask 1047559
      %v809 = vsel %vm808, %v786, %v807
      %811 = vmatpush.msra.mxu0 %v363
      %812 = vmatpush.msra.mxu0 %v362
      %813 = vmatpush.msra.mxu0 %v361
      %814 = vmatpush.msra.mxu0 %v360
      %815 = vmatpush.msra.mxu0 %v359
      %816 = vmatpush.msra.mxu0 %v358
      %817 = vmatpush.msra.mxu0 %v357
      %818 = vmatpush.msra.mxu0 %v356
      %819 = vmatpush.msra.mxu0 %v355
      %820 = vmatpush.msra.mxu0 %v354
      %821 = vmatpush.msra.mxu0 %v353
      %822 = vmatpush.msra.mxu0 %v352
      %823 = vmatpush.msra.mxu0 %v351
      %824 = vmatpush.msra.mxu0 %v350
      %825 = vmatpush.msra.mxu0 %v349
      %826 = vmatpush.msra.mxu0 %v348
      %827 = vmatmul.f32.gmra.mxu0 %v809
      %v828 = vpop.f32.mrf.mxu0
      %v829 = vadd.f32 %v787, %v828
      %830 = vdwg.mxu0
      %v831 = vmax.f32 %v829, 0.0
      %v832 = vperm.slane %v372, 3
      %vm833 = vcmask 523264
      %v835 = vsel %vm833, %v831, 0
      %837 = vmatpush.msra.mxu0 0.0
      %838 = vmatpush.msra.mxu0 0.0
      %839 = vmatpush.msra.mxu0 0.0
      %840 = vmatpush.msra.mxu0 0.0
      %841 = vmatpush.msra.mxu0 0.0
      %842 = vmatpush.msra.mxu0 0.0
      %843 = vmatpush.msra.mxu0 0.0
      %844 = vmatpush.msra.mxu0 0.0
      %845 = vmatpush.msra.mxu0 %v371
      %846 = vmatpush.msra.mxu0 %v370
      %847 = vmatpush.msra.mxu0 %v369
      %848 = vmatpush.msra.mxu0 %v368
      %849 = vmatpush.msra.mxu0 %v367
      %850 = vmatpush.msra.mxu0 %v366
      %851 = vmatpush.msra.mxu0 %v365
      %852 = vmatpush.msra.mxu0 %v364
      %853 = vmatmul.f32.gmra.mxu0 %v835
      %v854 = vpop.f32.mrf.mxu0
      %v855 = vadd.f32 %v832, %v854
      %856 = vdwg.mxu0
      %vm857 = vcmask 7168
      %858 = vst.msk [vmem:[%s298] sm:$0xff] %vm857, %v855
      %p859 = scmp.lt.s32.totalorder %s18, 1
      %s860 = scalar_select %p859, %s18, 1
      %s861 = smul.addr %s860, 8
      %s862 = scalar_lea.vmem %s7, %s861
      // Predicated region
      $region49: #{tpu_custom_call.1} parent=47 // pred_check
        %p863 = pneg %p193
      $region50: #{tpu_custom_call.1} parent=47 // pred_check_branch
        %865 = sbr.rel (%p863) target = $region52
      $region51: #{tpu_custom_call.1} parent=47 // pred_region
        _
      $region52: #{tpu_custom_call.1} parent=47 // pred_fallthru
        _
    $region48: #{tpu_custom_call.1} parent=5 // pred_fallthru
      _
    %p866 = scmp.le.s32.totalorder 2, %s13
    // Predicated region
    $region53: #{tpu_custom_call.1} parent=5 // pred_check
      %p867 = pneg %p866
    $region54: #{tpu_custom_call.1} parent=5 // pred_check_branch
      %869 = sbr.rel (%p867) target = $region56
    $region55: #{tpu_custom_call.1} parent=5 // pred_region
      %s870 = ssub.s32 %s13, 2
      // Predicated region
      $region57: #{tpu_custom_call.1} parent=55 // pred_check
        %p871 = pneg %p199
      $region58: #{tpu_custom_call.1} parent=55 // pred_check_branch
        %873 = sbr.rel (%p871) target = $region60
      $region59: #{tpu_custom_call.1} parent=55 // pred_region
        %p874 = scmp.lt.s32.totalorder %s19, 1
        %s875 = scalar_select %p874, %s19, 1
        %s876 = smul.addr %s875, 8
        %s877 = scalar_lea.vmem %s7, %s876
      $region60: #{tpu_custom_call.1} parent=55 // pred_fallthru
        _
    $region56: #{tpu_custom_call.1} parent=5 // pred_fallthru
      _
  $region6: #{tpu_custom_call.1} parent=0 // loop_footer
    %s17 = sadd.s32 1, %s13
  $region7: #{tpu_custom_call.1} parent=0 // loop_footer_branch
    %12 = sbr.rel target = $region3
  $region8: #{tpu_custom_call.1} parent=0 // loop_exit
    _

</llo_original>
